<compile_context>
chip_gen: v7x
topology: tpu7x:2x2x1
jax: 0.10.0
libtpu: 0.0.40
codegen_flags: <defaults>
</compile_context>

<pallas_src>
import functools

import jax
import jax.numpy as jnp
from jax.experimental import pallas as pl
from jax.experimental.pallas import tpu as pltpu


def _second_orthogonal_loss_kernel(fake_ref, reals_ref, out_ref, *,
                                   batch, tile_rows, feat):
    """One batch tile: partial sum of d_short / d_long over `tile_rows` rows."""
    fake = fake_ref[...].astype(jnp.float32)             # (TB, Dp)
    r0 = reals_ref[:, :feat].astype(jnp.float32)         # (TB, Dp) == reals[:, 0, :]
    r1 = reals_ref[:, feat:].astype(jnp.float32)         # (TB, Dp) == reals[:, 1, :]

    # L1 distances along the feature (lane) axis.
    d_short = jnp.sum(jnp.abs(fake - r0), axis=-1, keepdims=True)   # (TB, 1)
    d_long = jnp.sum(jnp.abs(fake - r1), axis=-1, keepdims=True)    # (TB, 1)

    if batch % tile_rows == 0:
        ratio = d_short * pl.reciprocal(d_long, approx=False)
    else:
        # Mask padded tail rows: contribute 0 and never divide by 0.
        rows = (pl.program_id(0) * tile_rows
                + jax.lax.broadcasted_iota(jnp.int32, (tile_rows, 1), 0))
        valid = rows < batch
        d_long_safe = jnp.where(valid, d_long, 1.0)
        ratio = jnp.where(valid,
                          d_short * pl.reciprocal(d_long_safe, approx=False),
                          0.0)

    partial = jnp.sum(ratio)                              # scalar
    # Lane-dense (unmasked) store of the per-tile partial sum.
    out_ref[...] = jnp.full(out_ref.shape, partial, dtype=jnp.float32)


def _vmem_capacity_bytes():
    """Physical VMEM per TensorCore; conservative default if the query fails."""
    try:
        return int(pltpu.get_tpu_info().vmem_capacity_bytes)
    except Exception:
        return 64 * 1024 * 1024      # v7x per-TC value (smallest current gen)


def _pick_tile_rows(batch, feat, itemsize, sublane_mult):
    """Rows per grid step, sized purely by bytes.

    Single-buffer input per step (fake: D + reals: 2D per row) is capped at
    min(12 MiB, VMEM/8): the pipeline double-buffers (x2) and the kernel
    materializes f32 intermediates, so the total working set stays well under
    64 MiB on v7x and far under 128 MiB on v5e/v6e.
    """
    vmem_cap = _vmem_capacity_bytes()
    budget = min(12 * 1024 * 1024, vmem_cap // 8)
    bytes_per_row = 3 * feat * itemsize

    tb = max(sublane_mult, budget // bytes_per_row)
    tb = max(sublane_mult, (tb // sublane_mult) * sublane_mult)

    padded_b = pl.cdiv(batch, sublane_mult) * sublane_mult
    tb = min(tb, padded_b)

    # v7x megacore: if the batch only yields 2-3 tiles, shrink the tile so the
    # "parallel" grid axis has >= 4 tiles and load-balances across both TCs.
    nt = pl.cdiv(batch, tb)
    if 1 < nt < 4 and batch >= 4 * sublane_mult:
        quarter = pl.cdiv(batch, 4)
        tb = max(sublane_mult,
                 pl.cdiv(quarter, sublane_mult) * sublane_mult)
        tb = min(tb, padded_b)
    return tb


def second_orthogonal_loss(fake, reals, *, tile_rows=None):
    """fake: (B, D), reals: (B, 2, D) -> scalar float32 mean(d_short / d_long)."""
    batch, feat = fake.shape
    assert reals.ndim == 3 and reals.shape == (batch, 2, feat)
    assert fake.dtype == reals.dtype

    itemsize = jnp.dtype(fake.dtype).itemsize
    # Sublane multiple: 8 for 32-bit, 16 for 16-bit, 32 for 8-bit dtypes.
    sublane_mult = max(8, 32 // itemsize)

    # Lane-align the feature axis so the in-kernel split of the two real rows
    # is a free (8,128)-tile slice (unaligned D would force VMEM copies /
    # XLU relayouts every step).  Zero-padding both operands adds |0-0| = 0 to
    # both L1 sums, so the result is unchanged.
    feat_p = pl.cdiv(feat, 128) * 128
    if feat_p != feat:
        fake = jnp.pad(fake, ((0, 0), (0, feat_p - feat)))
        reals = jnp.pad(reals, ((0, 0), (0, 0), (0, feat_p - feat)))

    # Contiguous collapse (B, 2, Dp) -> (B, 2*Dp): free (no HBM copy) for a
    # contiguous row-major `reals`; one DMA then streams both real rows.
    reals_flat = reals.reshape(batch, 2 * feat_p)

    tb = (tile_rows if tile_rows is not None
          else _pick_tile_rows(batch, feat_p, itemsize, sublane_mult))
    num_tiles = pl.cdiv(batch, tb)

    # Generation-aware scoped-VMEM limit: > v5e/v6e 16/32 MiB defaults, never
    # above physical (64 MiB/TC on v7x).  Our working set is sized to fit.
    vmem_limit = int(min(_vmem_capacity_bytes(), 64 * 1024 * 1024))

    # Advisory: bandwidth-heavy custom call (3 streamed arrays, ~6 flops/elem).
    bytes_accessed = (batch * feat_p * itemsize          # fake
                      + batch * 2 * feat_p * itemsize    # reals
                      + num_tiles * 8 * 128 * 4)         # per-tile partials
    cost = pl.CostEstimate(flops=6 * batch * feat_p,
                           transcendentals=0,
                           bytes_accessed=int(bytes_accessed))

    kernel = functools.partial(
        _second_orthogonal_loss_kernel,
        batch=batch, tile_rows=tb, feat=feat_p)

    partials = pl.pallas_call(
        kernel,
        out_shape=jax.ShapeDtypeStruct((num_tiles, 8, 128), jnp.float32),
        grid_spec=pltpu.PrefetchScalarGridSpec(
            num_scalar_prefetch=0,
            grid=(num_tiles,),
            in_specs=[
                pl.BlockSpec((tb, feat_p), lambda i: (i, 0)),       # fake tile
                pl.BlockSpec((tb, 2 * feat_p), lambda i: (i, 0)),   # both real rows
            ],
            out_specs=pl.BlockSpec((1, 8, 128), lambda i: (i, 0, 0)),
        ),
        compiler_params=pltpu.CompilerParams(
            # Independent per-tile partials -> both v7x TensorCores usable.
            dimension_semantics=("parallel",),
            vmem_limit_bytes=vmem_limit,
        ),
        cost_estimate=cost,
    )(fake, reals_flat)

    # Tiny finalize in JAX: sum of per-tile partials, divide by the true B.
    return jnp.sum(partials[:, 0, 0]) / batch


def second_orthogonal_loss_ref(fake, reals):
    fake = fake.astype(jnp.float32)
    reals = reals.astype(jnp.float32)
    d_short = jnp.sum(jnp.abs(fake - reals[:, 0, :]), axis=-1)
    d_long = jnp.sum(jnp.abs(fake - reals[:, 1, :]), axis=-1)
    return jnp.mean(d_short / d_long)


if __name__ == "__main__":
    key = jax.random.PRNGKey(0)
    k1, k2, k3, k4 = jax.random.split(key, 4)

    # Case 1: f32, lane-aligned D, single auto-sized tile.
    B, D = 24, 128
    fake = jax.random.normal(k1, (B, D), dtype=jnp.float32)
    reals = jax.random.normal(k2, (B, 2, D), dtype=jnp.float32)
    ref = second_orthogonal_loss_ref(fake, reals)

    loss = jax.block_until_ready(second_orthogonal_loss(fake, reals))
    assert jnp.allclose(loss, ref, rtol=1e-5, atol=1e-5), (loss, ref)

    # Case 2: multi-tile path with a ragged tail (grid pipelining + masking).
    loss_tiled = jax.block_until_ready(
        second_orthogonal_loss(fake, reals, tile_rows=16))
    assert jnp.allclose(loss_tiled, ref, rtol=1e-5, atol=1e-5), (loss_tiled, ref)

    # Case 3: bf16 inputs with unaligned D (exercises lane padding + 16-row
    # sublane rounding); kernel upcasts to f32 in VMEM.
    B2, D2 = 20, 100
    fake_bf = jax.random.normal(k3, (B2, D2), dtype=jnp.float32).astype(jnp.bfloat16)
    reals_bf = jax.random.normal(k4, (B2, 2, D2), dtype=jnp.float32).astype(jnp.bfloat16)
    ref_bf = second_orthogonal_loss_ref(fake_bf, reals_bf)

    loss_bf = jax.block_until_ready(second_orthogonal_loss(fake_bf, reals_bf))
    assert jnp.allclose(loss_bf, ref_bf, rtol=1e-4, atol=1e-4), (loss_bf, ref_bf)

    print("KERNEL_OK")
</pallas_src>

<mosaic_0001>
module attributes {stable_mosaic.version = 11 : i64} {
  func.func @_second_orthogonal_loss_kernel(%arg0: i32, %arg1: memref<24x128xf32, #tpu.memory_space<vmem>>, %arg2: memref<24x256xf32, #tpu.memory_space<vmem>>, %arg3: memref<1x8x128xf32, #tpu.memory_space<vmem>>) attributes {dimension_semantics = [#tpu.dimension_semantics<parallel>], iteration_bounds = array<i64: 1>, scalar_prefetch = 0 : i64, scratch_operands = 0 : i64, tpu.core_type = #tpu.core_type<tc>, window_params = [{transform_indices = @transform_0, window_bounds = array<i64: 24, 128>}, {transform_indices = @transform_1, window_bounds = array<i64: 24, 256>}, {transform_indices = @transform_2, window_bounds = array<i64: 1, 8, 128>}]} {
    %c0 = arith.constant 0 : index
    %c0_0 = arith.constant 0 : index
    %0 = vector.load %arg1[%c0, %c0_0] : memref<24x128xf32, #tpu.memory_space<vmem>>, vector<24x128xf32>
    %c0_1 = arith.constant 0 : index
    %c0_2 = arith.constant 0 : index
    %1 = vector.load %arg2[%c0_1, %c0_2] : memref<24x256xf32, #tpu.memory_space<vmem>>, vector<24x128xf32>
    %c0_3 = arith.constant 0 : index
    %c128 = arith.constant 128 : index
    %2 = vector.load %arg2[%c0_3, %c128] : memref<24x256xf32, #tpu.memory_space<vmem>>, vector<24x128xf32>
    %3 = arith.subf %0, %1 : vector<24x128xf32>
    %4 = math.absf %3 : vector<24x128xf32>
    %cst = arith.constant dense<0.000000e+00> : vector<24xf32>
    %5 = vector.multi_reduction <add>, %4, %cst [1] : vector<24x128xf32> to vector<24xf32>
    %6 = vector.shape_cast %5 : vector<24xf32> to vector<24x1xf32>
    %7 = arith.subf %0, %2 : vector<24x128xf32>
    %8 = math.absf %7 : vector<24x128xf32>
    %cst_4 = arith.constant dense<0.000000e+00> : vector<24xf32>
    %9 = vector.multi_reduction <add>, %8, %cst_4 [1] : vector<24x128xf32> to vector<24xf32>
    %10 = vector.shape_cast %9 : vector<24xf32> to vector<24x1xf32>
    %11 = tpu.reciprocal %10 : vector<24x1xf32> -> vector<24x1xf32>
    %12 = arith.mulf %6, %11 : vector<24x1xf32>
    %13 = vector.shape_cast %12 : vector<24x1xf32> to vector<1x24x1xf32>
    %cst_5 = arith.constant dense<0.000000e+00> : vector<1xf32>
    %14 = vector.multi_reduction <add>, %13, %cst_5 [1, 2] : vector<1x24x1xf32> to vector<1xf32>
    %15 = vector.shape_cast %14 : vector<1xf32> to vector<1x1x1xf32>
    %16 = vector.extract %15[0, 0, 0] : f32 from vector<1x1x1xf32>
    %17 = vector.broadcast %16 : f32 to vector<1x8x128xf32>
    %c0_6 = arith.constant 0 : index
    %c0_7 = arith.constant 0 : index
    %c0_8 = arith.constant 0 : index
    %18 = vector.load %arg3[%c0_6, %c0_7, %c0_8] : memref<1x8x128xf32, #tpu.memory_space<vmem>>, vector<1x8x128xf32>
    tpu.vector_store %arg3[%c0_6, %c0_7, %c0_8], %17 {strides = array<i32>} : memref<1x8x128xf32, #tpu.memory_space<vmem>>, vector<1x8x128xf32>,
    return
  }
  func.func @transform_0(%arg0: i32) -> (i32, i32) {
    %c0_i32 = arith.constant 0 : i32
    %c0_i32_0 = arith.constant 0 : i32
    return %arg0, %c0_i32 : i32, i32
  }
  func.func @transform_1(%arg0: i32) -> (i32, i32) {
    %c0_i32 = arith.constant 0 : i32
    %c0_i32_0 = arith.constant 0 : i32
    return %arg0, %c0_i32 : i32, i32
  }
  func.func @transform_2(%arg0: i32) -> (i32, i32, i32) {
    %c0_i32 = arith.constant 0 : i32
    %c0_i32_0 = arith.constant 0 : i32
    %c0_i32_1 = arith.constant 0 : i32
    return %arg0, %c0_i32, %c0_i32_0 : i32, i32, i32
  }
}

</mosaic_0001>

<llo_original>
// kernel: tpu_custom_call.1
$region0: #{tpu_custom_call.1}
  #allocation0 [shape = 'u32[]', space=smem, size = 0x4, offset = 0x4, fixed_abs, tag = 'smem constant byte address 0x4 - core index']
  #allocation1 [shape = 'u32[144,128]{1,0:T(1,128)}', space=vmem, size = 0x12000, scoped, tag = 'internal scratch']
  %s0 = inlined_call_operand.hbm [shape: f32[24,128], index: 0, kind: input, shape index: {}]
  %s1 = inlined_call_operand.hbm [shape: f32[24,256], index: 1, kind: input, shape index: {}]
  %s2 = inlined_call_operand.hbm [shape: f32[1,8,128], index: 2, kind: output, shape index: {}]
  %s3 = sld [smem:[#allocation0]]
  $region26: #{tpu_custom_call.1} parent=0
    _
  %s5 = ssub.s32 1, %s3
  %s6 = scalar_select 0, %s5, %s3
  $region1: #{tpu_custom_call.1} parent=0
    #allocation2 [shape = 'u8[12288]{0}', space=vmem, size = 0x3000, scoped, tag = 'input window, operand 0, single buffered']
    #allocation3 [shape = 's32[1]{0}', space=sflag, size = 0x4, scoped, tag = 'scoped memory for tpu_custom_call.1']
    #allocation4 [shape = 's32[1]{0}', space=sflag, size = 0x4, scoped, tag = 'scoped memory for tpu_custom_call.1']
    #allocation5 [shape = 'u8[24576]{0}', space=vmem, size = 0x6000, scoped, tag = 'input window, operand 1, single buffered']
    #allocation6 [shape = 's32[1]{0}', space=sflag, size = 0x4, scoped, tag = 'scoped memory for tpu_custom_call.1']
    #allocation7 [shape = 'u8[4096]{0}', space=vmem, size = 0x1000, scoped, tag = 'output window, operand 0, single buffered']
    %7 = vsyncpa [#allocation3], 0
    %8 = vsyncpa [#allocation6], 0
    %9 = vsyncpa [#allocation4], 0
    // Predicated region
    $region2: #{tpu_custom_call.1} parent=1 // pred_check
      _
    $region3: #{tpu_custom_call.1} parent=1 // pred_check_branch
      %11 = sbr.rel (0) target = $region5
    $region4: #{tpu_custom_call.1} parent=1 // pred_region
      %s13 = ssub.s32 384, 384
      %14 = vsyncadd [#allocation3], %s13
      %s15 = sshll.u32 [#allocation2], 4
      %s16 = int_to_ptr.vmem [resolvable:$true] %s15
      %21 = dma.hbm_to_vmem [thread:$0]  %s0, 384, %s16, [#allocation3], 128, 128, 8
    $region5: #{tpu_custom_call.1} parent=1 // pred_fallthru
      _
    // Predicated region
    $region6: #{tpu_custom_call.1} parent=1 // pred_check
      _
    $region7: #{tpu_custom_call.1} parent=1 // pred_check_branch
      %23 = sbr.rel (0) target = $region9
    $region8: #{tpu_custom_call.1} parent=1 // pred_region
      %s25 = ssub.s32 768, 768
      %26 = vsyncadd [#allocation6], %s25
      %s27 = sshll.u32 [#allocation5], 4
      %s28 = int_to_ptr.vmem [resolvable:$true] %s27
      %33 = dma.hbm_to_vmem [thread:$0]  %s1, 768, %s28, [#allocation6], 256, 256, 16
    $region9: #{tpu_custom_call.1} parent=1 // pred_fallthru
      _
    // Predicated region
    $region10: #{tpu_custom_call.1} parent=1 // pred_check
      _
    $region11: #{tpu_custom_call.1} parent=1 // pred_check_branch
      %35 = sbr.rel (0) target = $region13
    $region12: #{tpu_custom_call.1} parent=1 // pred_region
      %36 = dma.done [#allocation3], 384
    $region13: #{tpu_custom_call.1} parent=1 // pred_fallthru
      _
    // Predicated region
    $region14: #{tpu_custom_call.1} parent=1 // pred_check
      _
    $region15: #{tpu_custom_call.1} parent=1 // pred_check_branch
      %38 = sbr.rel (0) target = $region17
    $region16: #{tpu_custom_call.1} parent=1 // pred_region
      %39 = dma.done [#allocation6], 768
    $region17: #{tpu_custom_call.1} parent=1 // pred_fallthru
      _
    %v40 = vld [vmem:[#allocation2] sm:$0xff]
    %v41 = vld [vmem:[#allocation2 + $0x8] sm:$0xff]
    %v42 = vld [vmem:[#allocation2 + $0x10] sm:$0xff]
    %v43 = vld [vmem:[#allocation5] sm:$0xff]
    %v44 = vld [vmem:[#allocation5 + $0x10] sm:$0xff]
    %v45 = vld [vmem:[#allocation5 + $0x20] sm:$0xff]
    %v46 = vld [vmem:[#allocation5 + $0x8] sm:$0xff]
    %v47 = vld [vmem:[#allocation5 + $0x18] sm:$0xff]
    %v48 = vld [vmem:[#allocation5 + $0x28] sm:$0xff]
    %v49 = vsub.f32 %v40, %v43
    %v50 = vsub.f32 %v41, %v44
    %v51 = vsub.f32 %v42, %v45
    %v52 = vand.u32 2147483647, %v49
    %v53 = vand.u32 2147483647, %v50
    %v54 = vand.u32 2147483647, %v51
    %55 = vadd.xlane.f32.xlu0 %v52
    %v56 = vpop.xlane.xlu0 %55
    %57 = vadd.xlane.f32.xlu0 %v53
    %v58 = vpop.xlane.xlu0 %57
    %59 = vadd.xlane.f32.xlu0 %v54
    %v60 = vpop.xlane.xlu0 %59
    %v61 = vsub.f32 %v40, %v46
    %v62 = vsub.f32 %v41, %v47
    %v63 = vsub.f32 %v42, %v48
    %v64 = vand.u32 2147483647, %v61
    %v65 = vand.u32 2147483647, %v62
    %v66 = vand.u32 2147483647, %v63
    %67 = vadd.xlane.f32.xlu0 %v64
    %v68 = vpop.xlane.xlu0 %67
    %69 = vadd.xlane.f32.xlu0 %v65
    %v70 = vpop.xlane.xlu0 %69
    %71 = vadd.xlane.f32.xlu0 %v66
    %v72 = vpop.xlane.xlu0 %71
    %v73 = vrcp.pop %v68
    %v74 = vrcp.pop %v70
    %v75 = vrcp.pop %v72
    %v76 = vmul.f32 %v56, %v73
    %v77 = vmul.f32 %v58, %v74
    %v78 = vmul.f32 %v60, %v75
    %vm79 = vcmask 7168
    %v80 = vsel %vm79, %v76, 0.0
    %v81 = vsel %vm79, %v77, 0.0
    %v82 = vadd.f32 %v80, %v81
    %v83 = vsel %vm79, %v78, 0.0
    %v84 = vadd.f32 %v82, %v83
    %85 = vadd.xlane.f32.xlu0 %v84
    %v86 = vpop.xlane.xlu0 %85
    %v87 = vrot.slane %v86, 4
    %v88 = vadd.f32 %v86, %v87
    %v89 = vrot.slane %v88, 2
    %v90 = vadd.f32 %v88, %v89
    %v91 = vrot.slane %v90, 1
    %v92 = vadd.f32 %v90, %v91
    %s93 = vtos %v92
    %v94 = vstv %s93
    %95 = vst [vmem:[#allocation7] sm:$0xff] %v94
    // Predicated region
    $region18: #{tpu_custom_call.1} parent=1 // pred_check
      _
    $region19: #{tpu_custom_call.1} parent=1 // pred_check_branch
      %97 = sbr.rel (0) target = $region21
    $region20: #{tpu_custom_call.1} parent=1 // pred_region
      %s99 = ssub.s32 128, 128
      %100 = vsyncadd [#allocation4], %s99
      %s102 = sshll.u32 [#allocation7], 4
      %s103 = int_to_ptr.vmem [resolvable:$true] %s102
      %105 = dma.vmem_to_hbm [thread:$0]  %s103, 128, %s2, [#allocation4]
    $region21: #{tpu_custom_call.1} parent=1 // pred_fallthru
      _
    // Predicated region
    $region22: #{tpu_custom_call.1} parent=1 // pred_check
      _
    $region23: #{tpu_custom_call.1} parent=1 // pred_check_branch
      %107 = sbr.rel (0) target = $region25
    $region24: #{tpu_custom_call.1} parent=1 // pred_region
      %108 = dma.done [#allocation4], 128
    $region25: #{tpu_custom_call.1} parent=1 // pred_fallthru
      _
    %109 = vsyncpa [#allocation3], 1
    %110 = vsyncpa [#allocation6], 1
    %111 = vsyncpa [#allocation4], 1

</llo_original>
